<compile_context>
chip_gen: v6e
topology: v6e:2x2x1
jax: 0.10.0
libtpu: 0.0.40
codegen_flags: <defaults>
</compile_context>

<pallas_src>
import jax
import jax.numpy as jnp
from jax import lax
from jax.experimental import pallas as pl
from jax.experimental.pallas import tpu as pltpu

NEG = -1e30  # "impossible" score for padded tags (finite to avoid 0*inf NaNs)


# ---------------------------------------------------------------------------
# Kernel 1: classifier logits — (B*S, D) x (D, LP) + bias, large row tiles.
# ---------------------------------------------------------------------------
def _logits_kernel(x_ref, w_ref, b_ref, o_ref):
    o_ref[...] = (jnp.dot(x_ref[...], w_ref[...],
                          preferred_element_type=jnp.float32) + b_ref[...])


def _logits_pallas(x, W, bias, row_tile=512):
    B, S, D = x.shape
    LP = W.shape[1]
    R = B * S
    xr = x.astype(jnp.float32).reshape(R, D)
    blk = min(row_tile, ((R + 7) // 8) * 8)
    blk = ((blk + 7) // 8) * 8
    R_pad = ((R + blk - 1) // blk) * blk
    if R_pad != R:
        xr = jnp.pad(xr, ((0, R_pad - R), (0, 0)))
    out = pl.pallas_call(
        _logits_kernel,
        out_shape=jax.ShapeDtypeStruct((R_pad, LP), jnp.float32),
        grid_spec=pltpu.PrefetchScalarGridSpec(
            num_scalar_prefetch=0,
            grid=(R_pad // blk,),
            in_specs=[
                pl.BlockSpec((blk, D), lambda i: (i, 0)),     # activations
                pl.BlockSpec((D, LP), lambda i: (0, 0)),      # W (constant index map
                pl.BlockSpec((1, LP), lambda i: (0, 0)),      #   -> not re-DMA'd)
            ],
            out_specs=pl.BlockSpec((blk, LP), lambda i: (i, 0)),
        ),
        compiler_params=pltpu.CompilerParams(
            dimension_semantics=("parallel",),
            vmem_limit_bytes=48 * 1024 * 1024,
        ),
    )(xr, W, bias)
    return out[:R].reshape(B, S, LP)


# ---------------------------------------------------------------------------
# Kernel 2: CRF log-partition (forward algorithm), batch-tiled, length-bounded.
#   maxlen_ref : (ntiles,)   i32  SMEM (scalar prefetch) per-tile max length
#   logits_ref : (S, Bt, LP) f32  time-major logits for this batch tile
#   len_ref    : (Bt, 1)     i32  per-sequence lengths
#   expt_ref   : (LP, LP)    f32  exp(T - tmax) (padded rows/cols are exactly 0)
#   start_ref  : (1, LP)     f32
#   end_ref    : (1, LP)     f32
#   out_ref    : (Bt, 128)   f32  shifted log-partition per sequence (lane-dense)
#   alpha_scr  : (Bt, LP)    f32  VMEM scratch (forward variables)
# ---------------------------------------------------------------------------
def _crf_denom_kernel(maxlen_ref, logits_ref, len_ref, expt_ref,
                      start_ref, end_ref, out_ref, alpha_scr):
    tile_max_len = maxlen_ref[pl.program_id(0)]            # SMEM scalar
    lens = len_ref[...]                                     # (Bt, 1) i32
    expT = expt_ref[...]                                    # (LP, LP), hoisted

    alpha_scr[...] = start_ref[...] + logits_ref[0]         # (Bt, LP)

    # Sequential recursion bounded by the tile's true max length so fully
    # padded time steps are skipped.  Each applied step under-counts the
    # partition by exactly tmax (the exp(T - tmax) shift), corrected in the
    # wrapper with + tmax * sum(mask[:, 1:]).
    @pl.loop(1, tile_max_len)
    def _(t):
        alpha = alpha_scr[...]
        e = logits_ref[t]                                   # (Bt, LP)
        mx = jnp.max(alpha, axis=-1, keepdims=True)         # (Bt, 1)   XLU
        s = jnp.dot(jnp.exp(alpha - mx), expT,
                    preferred_element_type=jnp.float32)     # (Bt, LP)  MXU
        alpha_new = jnp.maximum(e + mx + jnp.log(s), NEG)
        live = t < lens                                     # (Bt, 1) bool
        alpha_scr[...] = jnp.where(live, alpha_new, alpha)

    stops = alpha_scr[...] + end_ref[...]                   # (Bt, LP)
    mxs = jnp.max(stops, axis=-1, keepdims=True)
    denom = mxs + jnp.log(jnp.sum(jnp.exp(stops - mxs), axis=-1, keepdims=True))
    out_ref[...] = jnp.broadcast_to(denom, out_ref.shape)   # lane-dense store


def _choose_batch_tile(B, S, LP, bt_target=64, vmem_budget_bytes=36 * 2**20):
    """Power-of-two batch tile (>=8) keeping the double-buffered (S, bt, LP)
    logits block under the VMEM budget, and >= 2 grid steps when possible so
    both v7x TensorCores get work."""
    per_row = 2 * S * LP * 4                    # double-buffered f32 bytes / row
    bt_mem = max(8, vmem_budget_bytes // max(per_row, 1))
    cap = max(8, min(bt_target, bt_mem))
    bt = 8
    while bt * 2 <= cap:
        bt *= 2
    B_pad = ((B + bt - 1) // bt) * bt
    while bt > 8 and B_pad // bt < 2:
        bt //= 2
        B_pad = ((B + bt - 1) // bt) * bt
    return bt, B_pad


def _crf_denom_pallas(logits, lengths, expT, start, end, bt_target=64):
    """logits: (B, S, LP) f32 (LP-padded); lengths: (B,) int32.
    Returns the shifted log-partition per sequence, shape (B,)."""
    B, S, LP = logits.shape
    bt, B_pad = _choose_batch_tile(B, S, LP, bt_target)
    pad = B_pad - B
    lg = logits
    lens = lengths.astype(jnp.int32)
    if pad:
        lg = jnp.pad(lg, ((0, pad), (0, 0), (0, 0)))
        lens = jnp.pad(lens, ((0, pad),))
    lg_tm = jnp.transpose(lg, (1, 0, 2))         # (S, B_pad, LP) — small vs x
    lens2 = lens[:, None]                        # (B_pad, 1) i32
    ntiles = B_pad // bt
    tile_maxlen = jnp.maximum(
        jnp.max(lens.reshape(ntiles, bt), axis=1), 1).astype(jnp.int32)

    out = pl.pallas_call(
        _crf_denom_kernel,
        out_shape=jax.ShapeDtypeStruct((B_pad, 128), jnp.float32),
        grid_spec=pltpu.PrefetchScalarGridSpec(
            num_scalar_prefetch=1,               # tile_maxlen lands in SMEM
            grid=(ntiles,),
            in_specs=[
                pl.BlockSpec((S, bt, LP), lambda b, ml: (0, b, 0)),  # logits
                pl.BlockSpec((bt, 1), lambda b, ml: (b, 0)),         # lengths
                pl.BlockSpec((LP, LP), lambda b, ml: (0, 0)),        # exp(T - tmax)
                pl.BlockSpec((1, LP), lambda b, ml: (0, 0)),         # start
                pl.BlockSpec((1, LP), lambda b, ml: (0, 0)),         # end
            ],
            out_specs=pl.BlockSpec((bt, 128), lambda b, ml: (b, 0)),
            scratch_shapes=[pltpu.VMEM((bt, LP), jnp.float32)],
        ),
        compiler_params=pltpu.CompilerParams(
            dimension_semantics=("parallel",),
            # 48 MiB is safe under v7x's 64 MiB physical VMEM; on v5e/v6e
            # (128 MiB) this can be raised toward ~96 MiB for deeper buffering.
            vmem_limit_bytes=48 * 1024 * 1024,
        ),
    )(tile_maxlen, lg_tm, lens2, expT, start, end)
    return out[:B, 0]


# ---------------------------------------------------------------------------
# Training-branch loss: Pallas classifier + Pallas log-partition + JAX gathers
# ---------------------------------------------------------------------------
def _crf_loss(x, mask, labels, padded, raw):
    Wp, bp, expT, startp, endp, tmax = padded
    T, start, end = raw["transitions"], raw["start"], raw["end"]
    L = raw["num_labels"]
    maskf = mask.astype(jnp.float32)
    lab = labels.astype(jnp.int32)

    logits_p = _logits_pallas(x, Wp, bp)               # (B, S, LP)  Pallas MXU
    logits = logits_p[:, :, :L]

    # numerator: gold tag-sequence score (O(B*S) gathers; kept as cheap JAX
    # glue on Pallas-produced logits — gathers are a poor fit for Pallas).
    emit = jnp.sum(maskf * jnp.take_along_axis(logits, lab[..., None],
                                               axis=-1)[..., 0], axis=1)
    trans = jnp.sum(maskf[:, 1:] * T[lab[:, :-1], lab[:, 1:]], axis=1)
    start_sc = start[lab[:, 0]]
    n = jnp.sum(maskf, axis=1).astype(jnp.int32)
    last_tags = jnp.take_along_axis(lab, jnp.maximum(n - 1, 0)[:, None],
                                    axis=1)[:, 0]
    end_sc = end[last_tags]
    numerator = emit + trans + start_sc + end_sc        # (B,)

    # denominator: Pallas forward recursion (shifted), then undo the shift.
    lengths = jnp.sum(mask.astype(jnp.int32), axis=1)
    denom_shifted = _crf_denom_pallas(logits_p, lengths, expT, startp, endp)
    correction = tmax * jnp.sum(maskf[:, 1:])

    return jnp.sum(denom_shifted) + correction - jnp.sum(numerator)


# ---------------------------------------------------------------------------
# Viterbi decode (inference branch) — JAX glue on Pallas-computed logits.
# ---------------------------------------------------------------------------
def _viterbi_decode(logits, mask, T, start, end):
    """logits: (B,S,L); mask: (B,S). Returns (B,S) int labels, masked pos 0."""
    B, S, L = logits.shape
    maskf = mask.astype(jnp.float32)

    v0 = start[None, :] + logits[:, 0, :]                        # (B, L)
    ident = jnp.arange(L, dtype=jnp.int32)[None, :]

    def fwd(v, inp):
        logit_t, m_t = inp                                       # (B,L), (B,)
        scores = v[:, :, None] + T[None, :, :]                   # (B, Lp, Ln)
        best = jnp.max(scores, axis=1)                           # (B, L)
        bp = jnp.argmax(scores, axis=1).astype(jnp.int32)        # (B, L)
        v_new = best + logit_t
        m = (m_t > 0.5)[:, None]
        v_out = jnp.where(m, v_new, v)
        bp_out = jnp.where(m, bp, jnp.broadcast_to(ident, bp.shape))
        return v_out, bp_out

    xs = (jnp.moveaxis(logits[:, 1:, :], 1, 0), jnp.moveaxis(maskf[:, 1:], 1, 0))
    v_final, bps = lax.scan(fwd, v0, xs)                         # (S-1, B, L)
    v_final = v_final + end[None, :]
    last_tag = jnp.argmax(v_final, axis=-1).astype(jnp.int32)    # (B,)

    def bwd(tag, bp_t):
        prev = jnp.take_along_axis(bp_t, tag[:, None], axis=1)[:, 0]
        return prev, tag

    first_tag, tags_fwd = lax.scan(bwd, last_tag, bps, reverse=True)
    path = jnp.concatenate([first_tag[None, :], tags_fwd], axis=0)   # (S, B)
    path = jnp.moveaxis(path, 0, 1)                                  # (B, S)
    return path * mask.astype(path.dtype)


# ---------------------------------------------------------------------------
# Parameter padding (label dim -> LP multiple of 128; padded tags hard-blocked)
# ---------------------------------------------------------------------------
def _pad_params(p):
    L = p["num_labels"]
    D = p["W"].shape[0]
    LP = max(128, ((L + 127) // 128) * 128)
    W = jnp.zeros((D, LP), jnp.float32).at[:, :L].set(p["W"])
    b = jnp.zeros((1, LP), jnp.float32).at[0, :L].set(p["b"])
    T = jnp.full((LP, LP), NEG, jnp.float32).at[:L, :L].set(p["transitions"])
    start = jnp.full((1, LP), NEG, jnp.float32).at[0, :L].set(p["start"])
    end = jnp.full((1, LP), NEG, jnp.float32).at[0, :L].set(p["end"])
    tmax = jnp.max(p["transitions"])          # max-shift for overflow-safe exp(T)
    expT = jnp.exp(T - tmax)                  # padded entries underflow to 0
    return W, b, expT, start, end, tmax


# ---------------------------------------------------------------------------
# Module wrapper (mirrors CRFOutputLayer.forward)
# ---------------------------------------------------------------------------
class CRFOutputLayer:
    """JAX/Pallas port of CRFOutputLayer (linear classifier + CRF)."""

    def __init__(self, in_dim, num_labels, key):
        self.in_dim = in_dim
        self.num_labels = num_labels
        k0, k1, k2, k3, k4 = jax.random.split(key, 5)
        self.params = dict(
            W=0.1 * jax.random.normal(k0, (in_dim, num_labels), jnp.float32),
            b=0.1 * jax.random.normal(k1, (num_labels,), jnp.float32),
            transitions=0.1 * jax.random.normal(k2, (num_labels, num_labels),
                                                jnp.float32),
            start=0.1 * jax.random.normal(k3, (num_labels,), jnp.float32),
            end=0.1 * jax.random.normal(k4, (num_labels,), jnp.float32),
            num_labels=num_labels,
        )
        (self._Wp, self._bp, self._expTp,
         self._startp, self._endp, self._tmax) = _pad_params(self.params)

    def __call__(self, x, mask, labels=None):
        outputs = {}
        if labels is not None:
            padded = (self._Wp, self._bp, self._expTp,
                      self._startp, self._endp, self._tmax)
            outputs["loss"] = _crf_loss(x, mask, labels, padded, self.params)
        else:
            L = self.num_labels
            logits = _logits_pallas(x, self._Wp, self._bp)[:, :, :L]
            outputs["predicted_label"] = _viterbi_decode(
                logits, mask, self.params["transitions"],
                self.params["start"], self.params["end"])
        return outputs


# ---------------------------------------------------------------------------
# Pure-JAX reference for the loss (sanity check only)
# ---------------------------------------------------------------------------
def _crf_loss_reference(x, mask, labels, p):
    W, b, T, start, end = p["W"], p["b"], p["transitions"], p["start"], p["end"]
    logits = jnp.einsum("bsd,dl->bsl", x, W) + b
    maskf = mask.astype(jnp.float32)
    B, S, L = logits.shape
    oh = jax.nn.one_hot(labels, L, dtype=jnp.float32)
    emit = jnp.sum(maskf[..., None] * oh * logits, axis=(1, 2))
    A = jnp.einsum("bsl,lm->bsm", oh, T)
    trans = jnp.sum(maskf[:, 1:, None] * A[:, :-1, :] * oh[:, 1:, :], axis=(1, 2))
    start_sc = jnp.sum(oh[:, 0, :] * start, axis=-1)
    n = jnp.sum(maskf, axis=1).astype(jnp.int32)
    last_tags = jnp.take_along_axis(labels, (n - 1)[:, None], axis=1)[:, 0]
    end_sc = jnp.sum(jax.nn.one_hot(last_tags, L) * end, axis=-1)
    num = emit + trans + start_sc + end_sc
    alpha = start[None, :] + logits[:, 0, :]
    for t in range(1, S):
        inner = alpha[:, :, None] + T[None, :, :] + logits[:, t, None, :]
        new_alpha = jax.nn.logsumexp(inner, axis=1)
        alpha = jnp.where(maskf[:, t, None] > 0.5, new_alpha, alpha)
    denom = jax.nn.logsumexp(alpha + end[None, :], axis=-1)
    return -jnp.sum(num - denom)


# ---------------------------------------------------------------------------
if __name__ == "__main__":
    key = jax.random.PRNGKey(0)
    B, S, D, L = 2, 8, 128, 5

    kx, kl, kp = jax.random.split(key, 3)
    x = jax.random.normal(kx, (B, S, D), jnp.float32)
    lengths = jnp.array([8, 5], dtype=jnp.int32)
    mask = (jnp.arange(S)[None, :] < lengths[:, None]).astype(jnp.int32)   # (B, S)
    labels = jax.random.randint(kl, (B, S), 0, L).astype(jnp.int32)        # (B, S)

    layer = CRFOutputLayer(in_dim=D, num_labels=L, key=kp)

    # training branch: loss (scalar)
    out_train = layer(x, mask, labels=labels)
    loss = jax.block_until_ready(out_train["loss"])

    # sanity check against a pure-JAX CRF reference
    ref_loss = _crf_loss_reference(x, mask, labels, layer.params)
    if not jnp.allclose(loss, ref_loss, rtol=1e-3, atol=1e-3):
        raise AssertionError(f"loss mismatch: kernel={loss} ref={ref_loss}")

    # inference branch: Viterbi-predicted labels (B, S)
    out_infer = layer(x, mask, labels=None)
    pred = jax.block_until_ready(out_infer["predicted_label"])
    assert pred.shape == (B, S)

    print("KERNEL_OK")
</pallas_src>

<mosaic_0001>
module attributes {stable_mosaic.version = 11 : i64} {
  func.func @_logits_kernel(%arg0: i32, %arg1: memref<16x128xf32, #tpu.memory_space<vmem>>, %arg2: memref<128x128xf32, #tpu.memory_space<vmem>>, %arg3: memref<1x128xf32, #tpu.memory_space<vmem>>, %arg4: memref<16x128xf32, #tpu.memory_space<vmem>>) attributes {dimension_semantics = [#tpu.dimension_semantics<parallel>], iteration_bounds = array<i64: 1>, scalar_prefetch = 0 : i64, scratch_operands = 0 : i64, tpu.core_type = #tpu.core_type<tc>, window_params = [{transform_indices = @transform_0, window_bounds = array<i64: 16, 128>}, {pipeline_mode = #tpu.pipeline_mode<synchronous>, transform_indices = @transform_1, window_bounds = array<i64: 128, 128>}, {pipeline_mode = #tpu.pipeline_mode<synchronous>, transform_indices = @transform_2, window_bounds = array<i64: 1, 128>}, {transform_indices = @transform_3, window_bounds = array<i64: 16, 128>}]} {
    %c0 = arith.constant 0 : index
    %c0_0 = arith.constant 0 : index
    %0 = vector.load %arg1[%c0, %c0_0] : memref<16x128xf32, #tpu.memory_space<vmem>>, vector<16x128xf32>
    %c0_1 = arith.constant 0 : index
    %c0_2 = arith.constant 0 : index
    %1 = vector.load %arg2[%c0_1, %c0_2] : memref<128x128xf32, #tpu.memory_space<vmem>>, vector<128x128xf32>
    %cst = arith.constant dense<0.000000e+00> : vector<16x128xf32>
    %2 = tpu.matmul %0, %1, %cst {dimension_numbers = #tpu.dot_dimension_numbers<[1], [0], [0], [1], [0, 0, 1, 1], [], []>} : vector<16x128xf32>, vector<128x128xf32>, vector<16x128xf32> -> vector<16x128xf32>
    %c0_3 = arith.constant 0 : index
    %c0_4 = arith.constant 0 : index
    %3 = vector.load %arg3[%c0_3, %c0_4] : memref<1x128xf32, #tpu.memory_space<vmem>>, vector<1x128xf32>
    %4 = vector.broadcast %3 : vector<1x128xf32> to vector<16x128xf32>
    %5 = arith.addf %2, %4 : vector<16x128xf32>
    %c0_5 = arith.constant 0 : index
    %c0_6 = arith.constant 0 : index
    %6 = vector.load %arg4[%c0_5, %c0_6] : memref<16x128xf32, #tpu.memory_space<vmem>>, vector<16x128xf32>
    tpu.vector_store %arg4[%c0_5, %c0_6], %5 {strides = array<i32>} : memref<16x128xf32, #tpu.memory_space<vmem>>, vector<16x128xf32>,
    return
  }
  func.func @transform_0(%arg0: i32) -> (i32, i32) {
    %c0_i32 = arith.constant 0 : i32
    %c0_i32_0 = arith.constant 0 : i32
    return %arg0, %c0_i32 : i32, i32
  }
  func.func @transform_1(%arg0: i32) -> (i32, i32) {
    %c0_i32 = arith.constant 0 : i32
    %c0_i32_0 = arith.constant 0 : i32
    %c0_i32_1 = arith.constant 0 : i32
    return %c0_i32, %c0_i32_0 : i32, i32
  }
  func.func @transform_2(%arg0: i32) -> (i32, i32) {
    %c0_i32 = arith.constant 0 : i32
    %c0_i32_0 = arith.constant 0 : i32
    %c0_i32_1 = arith.constant 0 : i32
    return %c0_i32, %c0_i32_0 : i32, i32
  }
  func.func @transform_3(%arg0: i32) -> (i32, i32) {
    %c0_i32 = arith.constant 0 : i32
    %c0_i32_0 = arith.constant 0 : i32
    return %arg0, %c0_i32 : i32, i32
  }
}

</mosaic_0001>

<llo_original>
// kernel: tpu_custom_call.1
$region0: #{tpu_custom_call.1}
  #allocation0 [shape = 'u32[]', space=smem, size = 0x4, offset = 0x4, fixed_abs, tag = 'smem constant byte address 0x4 - core index']
  #allocation1 [shape = 'u32[144,128]{1,0:T(1,128)}', space=vmem, size = 0x12000, scoped, tag = 'internal scratch']
  %s0 = inlined_call_operand.hbm [shape: f32[16,128], index: 0, kind: input, shape index: {}]
  %s1 = inlined_call_operand.hbm [shape: f32[128,128], index: 1, kind: input, shape index: {}]
  %s2 = inlined_call_operand.vmem [shape: f32[1,128], index: 2, kind: input, shape index: {}]
  %s3 = inlined_call_operand.hbm [shape: f32[16,128], index: 3, kind: output, shape index: {}]
  %s4 = sld [smem:[#allocation0]]
  $region30: #{tpu_custom_call.1} parent=0
    _
  %s6 = ssub.s32 1, %s4
  %s7 = scalar_select 0, %s6, %s4
  $region1: #{tpu_custom_call.1} parent=0
    #allocation2 [shape = 'u8[8192]{0}', space=vmem, size = 0x2000, scoped, tag = 'input window, operand 0, single buffered']
    #allocation3 [shape = 's32[1]{0}', space=sflag, size = 0x4, scoped, tag = 'scoped memory for tpu_custom_call.1']
    #allocation4 [shape = 's32[1]{0}', space=sflag, size = 0x4, scoped, tag = 'scoped memory for tpu_custom_call.1']
    #allocation5 [shape = 'u8[65536]{0}', space=vmem, size = 0x10000, scoped, tag = 'input window, operand 1, single buffered']
    #allocation6 [shape = 's32[1]{0}', space=sflag, size = 0x4, scoped, tag = 'scoped memory for tpu_custom_call.1']
    #allocation7 [shape = 'u8[8192]{0}', space=vmem, size = 0x2000, scoped, tag = 'output window, operand 0, single buffered']
    %8 = vsyncpa [#allocation3], 0
    %9 = vsyncpa [#allocation6], 0
    %10 = vsyncpa [#allocation4], 0
    // Predicated region
    $region2: #{tpu_custom_call.1} parent=1 // pred_check
      _
    $region3: #{tpu_custom_call.1} parent=1 // pred_check_branch
      %12 = sbr.rel (0) target = $region5
    $region4: #{tpu_custom_call.1} parent=1 // pred_region
      %s14 = ssub.s32 256, 256
      %15 = vsyncadd [#allocation3], %s14
      %s16 = sshll.u32 [#allocation2], 4
      %s17 = int_to_ptr.vmem [resolvable:$true] %s16
      %22 = dma.hbm_to_vmem [thread:$0]  %s0, 256, %s17, [#allocation3], 128, 128, 8
    $region5: #{tpu_custom_call.1} parent=1 // pred_fallthru
      _
    // Predicated region
    $region6: #{tpu_custom_call.1} parent=1 // pred_check
      _
    $region7: #{tpu_custom_call.1} parent=1 // pred_check_branch
      %24 = sbr.rel (0) target = $region9
    $region8: #{tpu_custom_call.1} parent=1 // pred_region
      %s26 = ssub.s32 2048, 2048
      %27 = vsyncadd [#allocation6], %s26
      %s28 = sshll.u32 [#allocation5], 4
      %s29 = int_to_ptr.vmem [resolvable:$true] %s28
      %34 = dma.hbm_to_vmem [thread:$0]  %s1, 2048, %s29, [#allocation6], 128, 128, 8
    $region9: #{tpu_custom_call.1} parent=1 // pred_fallthru
      _
    // Predicated region
    $region10: #{tpu_custom_call.1} parent=1 // pred_check
      _
    $region11: #{tpu_custom_call.1} parent=1 // pred_check_branch
      %36 = sbr.rel (0) target = $region13
    $region12: #{tpu_custom_call.1} parent=1 // pred_region
      _
    $region13: #{tpu_custom_call.1} parent=1 // pred_fallthru
      _
    // Predicated region
    $region14: #{tpu_custom_call.1} parent=1 // pred_check
      _
    $region15: #{tpu_custom_call.1} parent=1 // pred_check_branch
      %38 = sbr.rel (0) target = $region17
    $region16: #{tpu_custom_call.1} parent=1 // pred_region
      %39 = dma.done [#allocation3], 256
    $region17: #{tpu_custom_call.1} parent=1 // pred_fallthru
      _
    // Predicated region
    $region18: #{tpu_custom_call.1} parent=1 // pred_check
      _
    $region19: #{tpu_custom_call.1} parent=1 // pred_check_branch
      %41 = sbr.rel (0) target = $region21
    $region20: #{tpu_custom_call.1} parent=1 // pred_region
      %42 = dma.done [#allocation6], 2048
    $region21: #{tpu_custom_call.1} parent=1 // pred_fallthru
      _
    %v43 = vld [vmem:[#allocation2] sm:$0xff]
    %v44 = vld [vmem:[#allocation2 + $0x8] sm:$0xff]
    %v45 = vld [vmem:[#allocation5] sm:$0xff]
    %v46 = vld [vmem:[#allocation5 + $0x8] sm:$0xff]
    %v47 = vld [vmem:[#allocation5 + $0x10] sm:$0xff]
    %v48 = vld [vmem:[#allocation5 + $0x18] sm:$0xff]
    %v49 = vld [vmem:[#allocation5 + $0x20] sm:$0xff]
    %v50 = vld [vmem:[#allocation5 + $0x28] sm:$0xff]
    %v51 = vld [vmem:[#allocation5 + $0x30] sm:$0xff]
    %v52 = vld [vmem:[#allocation5 + $0x38] sm:$0xff]
    %v53 = vld [vmem:[#allocation5 + $0x40] sm:$0xff]
    %v54 = vld [vmem:[#allocation5 + $0x48] sm:$0xff]
    %v55 = vld [vmem:[#allocation5 + $0x50] sm:$0xff]
    %v56 = vld [vmem:[#allocation5 + $0x58] sm:$0xff]
    %v57 = vld [vmem:[#allocation5 + $0x60] sm:$0xff]
    %v58 = vld [vmem:[#allocation5 + $0x68] sm:$0xff]
    %v59 = vld [vmem:[#allocation5 + $0x70] sm:$0xff]
    %v60 = vld [vmem:[#allocation5 + $0x78] sm:$0xff]
    %v61 = vld [vmem:[%s2] sm:$0x1]
    %v63 = vlaneseq
    %v64 = vshrl.u32 %v63, 7
    %v65 = vsub.s32 0, %v64
    %v66 = vrot.slane %v61, %v65
    %68 = vmatprep.subr.mxu0 0.0
    %69 = vmatpush1.msra.mxu0 %v60
    %70 = vmatprep.subr.mxu0 0.0
    %71 = vmatpush1.msra.mxu0 %v59
    %72 = vmatprep.subr.mxu0 0.0
    %73 = vmatpush1.msra.mxu0 %v58
    %74 = vmatprep.subr.mxu0 0.0
    %75 = vmatpush1.msra.mxu0 %v57
    %76 = vmatprep.subr.mxu0 0.0
    %77 = vmatpush1.msra.mxu0 %v56
    %78 = vmatprep.subr.mxu0 0.0
    %79 = vmatpush1.msra.mxu0 %v55
    %80 = vmatprep.subr.mxu0 0.0
    %81 = vmatpush1.msra.mxu0 %v54
    %82 = vmatprep.subr.mxu0 0.0
    %83 = vmatpush1.msra.mxu0 %v53
    %84 = vmatprep.subr.mxu0 0.0
    %85 = vmatpush1.msra.mxu0 %v52
    %86 = vmatprep.subr.mxu0 0.0
    %87 = vmatpush1.msra.mxu0 %v51
    %88 = vmatprep.subr.mxu0 0.0
    %89 = vmatpush1.msra.mxu0 %v50
    %90 = vmatprep.subr.mxu0 0.0
    %91 = vmatpush1.msra.mxu0 %v49
    %92 = vmatprep.subr.mxu0 0.0
    %93 = vmatpush1.msra.mxu0 %v48
    %94 = vmatprep.subr.mxu0 0.0
    %95 = vmatpush1.msra.mxu0 %v47
    %96 = vmatprep.subr.mxu0 0.0
    %97 = vmatpush1.msra.mxu0 %v46
    %98 = vmatprep.subr.mxu0 0.0
    %99 = vmatpush1.msra.mxu0 %v45
    %100 = vmatprep.subr.mxu0 0.0
    %101 = vmatpush2.msra.mxu0 0.0
    %102 = vmatprep.subr.mxu0 0.0
    %103 = vmatpush2.msra.mxu0 0.0
    %104 = vmatprep.subr.mxu0 0.0
    %105 = vmatpush2.msra.mxu0 0.0
    %106 = vmatprep.subr.mxu0 0.0
    %107 = vmatpush2.msra.mxu0 0.0
    %108 = vmatprep.subr.mxu0 0.0
    %109 = vmatpush2.msra.mxu0 0.0
    %110 = vmatprep.subr.mxu0 0.0
    %111 = vmatpush2.msra.mxu0 0.0
    %112 = vmatprep.subr.mxu0 0.0
    %113 = vmatpush2.msra.mxu0 0.0
    %114 = vmatprep.subr.mxu0 0.0
    %115 = vmatpush2.msra.mxu0 0.0
    %116 = vmatprep.subr.mxu0 0.0
    %117 = vmatpush2.msra.mxu0 0.0
    %118 = vmatprep.subr.mxu0 0.0
    %119 = vmatpush2.msra.mxu0 0.0
    %120 = vmatprep.subr.mxu0 0.0
    %121 = vmatpush2.msra.mxu0 0.0
    %122 = vmatprep.subr.mxu0 0.0
    %123 = vmatpush2.msra.mxu0 0.0
    %124 = vmatprep.subr.mxu0 0.0
    %125 = vmatpush2.msra.mxu0 0.0
    %126 = vmatprep.subr.mxu0 0.0
    %127 = vmatpush2.msra.mxu0 0.0
    %128 = vmatprep.subr.mxu0 0.0
    %129 = vmatpush2.msra.mxu0 0.0
    %130 = vmatprep.subr.mxu0 0.0
    %131 = vmatpush2.msra.mxu0 0.0
    %132 = vmatprep.mubr.f32.mxu0 0.0
    %133 = vmatmul.mubr.f32.gmra.mxu0 %v43
    %v134 = vpop.f32.mrf.mxu0
    %v135 = vadd.f32 %v66, %v134
    %v136 = vpop.f32.mrf.mxu0
    %137 = vmatprep.mubr.f32.mxu0 0.0
    %138 = vmatmul.mubr.f32.gmra.mxu0 %v44
    %v139 = vpop.f32.mrf.mxu0
    %v140 = vadd.f32 %v66, %v139
    %v141 = vpop.f32.mrf.mxu0
    %142 = vdwg.mxu0
    %143 = vst [vmem:[#allocation7] sm:$0xff] %v135
    %144 = vst [vmem:[#allocation7 + $0x8] sm:$0xff] %v140
    // Predicated region
    $region22: #{tpu_custom_call.1} parent=1 // pred_check
      _
    $region23: #{tpu_custom_call.1} parent=1 // pred_check_branch
      %146 = sbr.rel (0) target = $region25
    $region24: #{tpu_custom_call.1} parent=1 // pred_region
      %s148 = ssub.s32 256, 256
      %149 = vsyncadd [#allocation4], %s148
      %s150 = sshll.u32 [#allocation7], 4
      %s151 = int_to_ptr.vmem [resolvable:$true] %s150
      %156 = dma.vmem_to_hbm [thread:$0]  %s151, 256, %s3, [#allocation4], 128, 128, 8
    $region25: #{tpu_custom_call.1} parent=1 // pred_fallthru
      _
    // Predicated region
    $region26: #{tpu_custom_call.1} parent=1 // pred_check
      _
    $region27: #{tpu_custom_call.1} parent=1 // pred_check_branch
      %158 = sbr.rel (0) target = $region29
    $region28: #{tpu_custom_call.1} parent=1 // pred_region
      %159 = dma.done [#allocation4], 256
    $region29: #{tpu_custom_call.1} parent=1 // pred_fallthru
      _
    %160 = vsyncpa [#allocation3], 1
    %161 = vsyncpa [#allocation6], 1
    %162 = vsyncpa [#allocation4], 1

</llo_original>
